<compile_context>
chip_gen: v7x
topology: tpu7x:2x2x1
jax: 0.10.0
libtpu: 0.0.40
codegen_flags: <defaults>
</compile_context>

<pallas_src>
import numpy as np
import jax
import jax.numpy as jnp
from jax.experimental import pallas as pl
from jax.experimental.pallas import tpu as pltpu


def _round_up(x, m):
    return (x + m - 1) // m * m


def _convt_kernel(x_ref, w_ref, b_ref, o_ref):
    # x_ref: (tile_m, 8*Cin) bf16 | w_ref: (8*Cin, 8*Cout_p) bf16
    # b_ref: (1, 8*Cout_p) f32    | o_ref: (tile_m, 8*Cout_p) f32
    acc = jnp.dot(x_ref[...], w_ref[...], preferred_element_type=jnp.float32)
    o_ref[...] = (acc + b_ref[...]).astype(o_ref.dtype)


def conv_transpose3d_pallas(x, weight, bias, *, stride=2, padding=1,
                            output_padding=1, tile_m=1024,
                            compute_dtype=jnp.bfloat16):
    """x: (N, Cin, D, H, W) f32; weight: (Cin, Cout, K, K, K); bias: (Cout,)."""
    N, Cin, D, H, W = x.shape
    Cout = weight.shape[1]
    K = weight.shape[2]
    # TODO(synk): only the module's default hyper-params (k=3, s=2, p=1, op=1)
    # are handled by the phase-decomposed fast path.
    assert (K, stride, padding, output_padding) == (3, 2, 1, 1)

    Do, Ho, Wo = 2 * D, 2 * H, 2 * W
    M = D * H * W

    # ---- glue (pure data movement + tiny einsum, runs in XLA) --------------
    # 2x2x2 window im2col of the un-dilated input, channels-last.
    x_cl = jnp.transpose(x, (0, 2, 3, 4, 1))                     # (N,D,H,W,Cin)
    x_pad = jnp.pad(x_cl, ((0, 0), (0, 1), (0, 1), (0, 1), (0, 0)))
    taps = [x_pad[:, a:a + D, b:b + H, c:c + W, :]
            for a in range(2) for b in range(2) for c in range(2)]
    x_col = jnp.stack(taps, axis=-2).reshape(N, M, 8 * Cin)      # (N, M, 8*Cin)

    # Per-(tap, phase) weight matrix.  S[d, p, k] = 1 iff original kernel index
    # k feeds output phase p from input-tap offset d (stride-2 decomposition).
    S = np.zeros((2, 2, 3), np.float32)
    S[0, 0, 1] = 1.0   # even phase <- offset 0 tap, weight[..., 1]
    S[0, 1, 2] = 1.0   # odd  phase <- offset 0 tap, weight[..., 2]
    S[1, 1, 0] = 1.0   # odd  phase <- offset 1 tap, weight[..., 0]
    # weight: (Cin, Cout, kd, kh, kw) -> (dd,dh,dw,Cin, pd,ph,pw,Cout)
    w_phase = jnp.einsum('apx,bqy,crz,ioxyz->abcipqro',
                         S, S, S, weight.astype(jnp.float32))

    Cout_p = _round_up(Cout, 16)            # lane-dense: 8*Cout_p % 128 == 0
    Ncols = 8 * Cout_p
    K8 = 8 * Cin
    w_col = jnp.zeros((K8, 8, Cout_p), jnp.float32)
    w_col = w_col.at[:, :, :Cout].set(w_phase.reshape(K8, 8, Cout))
    w_col = w_col.reshape(K8, Ncols)

    b_col = jnp.zeros((8, Cout_p), jnp.float32).at[:, :Cout].set(
        jnp.broadcast_to(bias.astype(jnp.float32), (8, Cout)))
    b_col = b_col.reshape(1, Ncols)

    # Row (M) tiling: pad M so the grid divides evenly (no in-kernel masking).
    tile_m = max(8, (min(tile_m, _round_up(M, 8)) // 8) * 8)
    M_p = _round_up(M, tile_m)
    if M_p != M:
        x_col = jnp.pad(x_col, ((0, 0), (0, M_p - M), (0, 0)))

    x_col = x_col.astype(compute_dtype)
    w_col = w_col.astype(compute_dtype)

    grid = (N, M_p // tile_m)
    out_flat = pl.pallas_call(
        _convt_kernel,
        out_shape=jax.ShapeDtypeStruct((N, M_p, Ncols), jnp.float32),
        grid_spec=pltpu.PrefetchScalarGridSpec(
            num_scalar_prefetch=0,
            grid=grid,
            in_specs=[
                pl.BlockSpec((pl.Squeezed(), tile_m, K8),
                             lambda n, m: (n, m, 0)),
                pl.BlockSpec((K8, Ncols), lambda n, m: (0, 0)),   # resident
                pl.BlockSpec((1, Ncols), lambda n, m: (0, 0)),    # resident
            ],
            out_specs=pl.BlockSpec((pl.Squeezed(), tile_m, Ncols),
                                   lambda n, m: (n, m, 0)),
        ),
        compiler_params=pltpu.CompilerParams(
            dimension_semantics=("parallel", "parallel")),
    )(x_col, w_col, b_col)

    # ---- reassemble phases into (N, Cout, 2D, 2H, 2W) ----------------------
    out = out_flat[:, :M, :].reshape(N, D, H, W, 2, 2, 2, Cout_p)[..., :Cout]
    out = jnp.transpose(out, (0, 1, 4, 2, 5, 3, 6, 7))   # (N,D,2,H,2,W,2,Cout)
    out = out.reshape(N, Do, Ho, Wo, Cout)
    return jnp.transpose(out, (0, 4, 1, 2, 3))            # back to NCDHW


def init_params(key, in_channels, out_channels, k=3):
    """Deterministic synthetic init (uniform, ~PyTorch-style scale)."""
    kw_, kb = jax.random.split(key)
    bound = 1.0 / np.sqrt(in_channels * k ** 3)
    weight = jax.random.uniform(kw_, (in_channels, out_channels, k, k, k),
                                jnp.float32, -bound, bound)
    bias = jax.random.uniform(kb, (out_channels,), jnp.float32, -bound, bound)
    return weight, bias


def ref_conv_transpose3d(x, weight, bias, stride=2, padding=1, output_padding=1):
    """Direct NumPy implementation of PyTorch ConvTranspose3d semantics (scatter-add)."""
    x = np.asarray(x, np.float32)
    w = np.asarray(weight, np.float32)
    b = np.asarray(bias, np.float32)
    N, Cin, D, H, W = x.shape
    Cout, K = w.shape[1], w.shape[2]
    Do = (D - 1) * stride - 2 * padding + K + output_padding
    Ho = (H - 1) * stride - 2 * padding + K + output_padding
    Wo = (W - 1) * stride - 2 * padding + K + output_padding
    big = np.zeros((N, Cout, (D - 1) * stride + K,
                    (H - 1) * stride + K, (W - 1) * stride + K), np.float32)
    for kd in range(K):
        for kh in range(K):
            for kw in range(K):
                c = np.einsum('ncdhw,co->nodhw', x, w[:, :, kd, kh, kw])
                big[:, :,
                    kd:kd + (D - 1) * stride + 1:stride,
                    kh:kh + (H - 1) * stride + 1:stride,
                    kw:kw + (W - 1) * stride + 1:stride] += c
    out = big[:, :, padding:padding + Do, padding:padding + Ho,
              padding:padding + Wo]
    return out + b.reshape(1, Cout, 1, 1, 1)


if __name__ == "__main__":
    key = jax.random.PRNGKey(0)
    kx, kp = jax.random.split(key)

    N, Cin, Cout, D = 2, 4, 8, 8                      # input (2, 4, 8, 8, 8) NCDHW
    x = jax.random.uniform(kx, (N, Cin, D, D, D), jnp.float32, -1.0, 1.0)
    weight, bias = init_params(kp, Cin, Cout)

    fwd = jax.jit(conv_transpose3d_pallas)
    out = jax.block_until_ready(fwd(x, weight, bias))

    ref = ref_conv_transpose3d(x, weight, bias)
    assert out.shape == ref.shape == (N, Cout, 2 * D, 2 * D, 2 * D)
    np.testing.assert_allclose(np.asarray(out), ref, rtol=2e-2, atol=1e-2)
    print("KERNEL_OK")
</pallas_src>

<mosaic_0001>
module attributes {stable_mosaic.version = 11 : i64} {
  func.func @_convt_kernel(%arg0: i32, %arg1: i32, %arg2: memref<1x512x32xbf16, #tpu.memory_space<vmem>>, %arg3: memref<32x128xbf16, #tpu.memory_space<vmem>>, %arg4: memref<1x128xf32, #tpu.memory_space<vmem>>, %arg5: memref<1x512x128xf32, #tpu.memory_space<vmem>>) attributes {dimension_semantics = [#tpu.dimension_semantics<parallel>, #tpu.dimension_semantics<parallel>], iteration_bounds = array<i64: 2, 1>, scalar_prefetch = 0 : i64, scratch_operands = 0 : i64, tpu.core_type = #tpu.core_type<tc>, window_params = [{transform_indices = @transform_0, window_bounds = array<i64: 1, 512, 32>}, {pipeline_mode = #tpu.pipeline_mode<synchronous>, transform_indices = @transform_1, window_bounds = array<i64: 32, 128>}, {pipeline_mode = #tpu.pipeline_mode<synchronous>, transform_indices = @transform_2, window_bounds = array<i64: 1, 128>}, {transform_indices = @transform_3, window_bounds = array<i64: 1, 512, 128>}]} {
    %c0 = arith.constant 0 : index
    %c0_0 = arith.constant 0 : index
    %c0_1 = arith.constant 0 : index
    %0 = vector.load %arg2[%c0, %c0_0, %c0_1] : memref<1x512x32xbf16, #tpu.memory_space<vmem>>, vector<1x512x32xbf16>
    %1 = vector.shape_cast %0 : vector<1x512x32xbf16> to vector<512x32xbf16>
    %c0_2 = arith.constant 0 : index
    %c0_3 = arith.constant 0 : index
    %2 = vector.load %arg3[%c0_2, %c0_3] : memref<32x128xbf16, #tpu.memory_space<vmem>>, vector<32x128xbf16>
    %cst = arith.constant dense<0.000000e+00> : vector<512x128xf32>
    %3 = tpu.matmul %1, %2, %cst {dimension_numbers = #tpu.dot_dimension_numbers<[1], [0], [0], [1], [0, 0, 1, 1], [], []>} : vector<512x32xbf16>, vector<32x128xbf16>, vector<512x128xf32> -> vector<512x128xf32>
    %c0_4 = arith.constant 0 : index
    %c0_5 = arith.constant 0 : index
    %4 = vector.load %arg4[%c0_4, %c0_5] : memref<1x128xf32, #tpu.memory_space<vmem>>, vector<1x128xf32>
    %5 = vector.broadcast %4 : vector<1x128xf32> to vector<512x128xf32>
    %6 = arith.addf %3, %5 : vector<512x128xf32>
    %c0_6 = arith.constant 0 : index
    %c0_7 = arith.constant 0 : index
    %c0_8 = arith.constant 0 : index
    %7 = vector.load %arg5[%c0_6, %c0_7, %c0_8] : memref<1x512x128xf32, #tpu.memory_space<vmem>>, vector<1x512x128xf32>
    %8 = vector.shape_cast %7 : vector<1x512x128xf32> to vector<512x128xf32>
    %9 = vector.shape_cast %6 : vector<512x128xf32> to vector<1x512x128xf32>
    tpu.vector_store %arg5[%c0_6, %c0_7, %c0_8], %9 {strides = array<i32>} : memref<1x512x128xf32, #tpu.memory_space<vmem>>, vector<1x512x128xf32>,
    return
  }
  func.func @transform_0(%arg0: i32, %arg1: i32) -> (i32, i32, i32) {
    %c0_i32 = arith.constant 0 : i32
    %c0_i32_0 = arith.constant 0 : i32
    return %arg0, %arg1, %c0_i32 : i32, i32, i32
  }
  func.func @transform_1(%arg0: i32, %arg1: i32) -> (i32, i32) {
    %c0_i32 = arith.constant 0 : i32
    %c0_i32_0 = arith.constant 0 : i32
    %c0_i32_1 = arith.constant 0 : i32
    return %c0_i32, %c0_i32_0 : i32, i32
  }
  func.func @transform_2(%arg0: i32, %arg1: i32) -> (i32, i32) {
    %c0_i32 = arith.constant 0 : i32
    %c0_i32_0 = arith.constant 0 : i32
    %c0_i32_1 = arith.constant 0 : i32
    return %c0_i32, %c0_i32_0 : i32, i32
  }
  func.func @transform_3(%arg0: i32, %arg1: i32) -> (i32, i32, i32) {
    %c0_i32 = arith.constant 0 : i32
    %c0_i32_0 = arith.constant 0 : i32
    return %arg0, %arg1, %c0_i32 : i32, i32, i32
  }
}

</mosaic_0001>

<llo_original>
// kernel: conv_transpose3d_pallas.1
$region0: #{conv_transpose3d_pallas.1}
  #allocation0 [shape = 'u32[]', space=smem, size = 0x4, offset = 0x4, fixed_abs, tag = 'smem constant byte address 0x4 - core index']
  #allocation1 [shape = 'u32[144,128]{1,0:T(1,128)}', space=vmem, size = 0x12000, scoped, tag = 'internal scratch']
  %s0 = inlined_call_operand.vmem [shape: bf16[2,512,32], index: 0, kind: input, shape index: {}]
  %s1 = inlined_call_operand.vmem [shape: bf16[32,128], index: 1, kind: input, shape index: {}]
  %s2 = inlined_call_operand.vmem [shape: f32[1,128], index: 2, kind: input, shape index: {}]
  %s3 = inlined_call_operand.vmem [shape: f32[2,512,128], index: 3, kind: output, shape index: {}]
  %s4 = sld [smem:[#allocation0]]
  $region45: #{conv_transpose3d_pallas.1} parent=0
    _
  %s6 = ssub.s32 1, %s4
  %s7 = scalar_select 0, %s6, %s4
  loop: start=0, step=1, limit=4
  $region2: #{conv_transpose3d_pallas.1} parent=0 // loop_pre_header
    _
  $region3: #{conv_transpose3d_pallas.1} parent=0 // loop_header
    %s9 = sphi 0, %s13
    %p10 = scmp.ge.s32.totalorder %s9, 4
    %s16 = sphi 0, %s28
    %s17 = sphi 0, %s24
    %s18 = sphi 0, %s16
    %s19 = sphi 0, %s17
    %s20 = sphi 0, %s18
    %s21 = sphi 0, %s19
    %s33 = sphi 0, %s35
    %s36 = sphi 0, %s33
    %s37 = sphi 0, %s36
    %s53 = sphi 0, %s37
    %s57 = sphi 0, %s57
    %s59 = sphi 0, %s57
    %s60 = sphi 0, %s59
    %s74 = sphi 0, %s60
    %s78 = sphi 0, %s78
    %s80 = sphi 0, %s78
    %s81 = sphi 0, %s80
    %s95 = sphi 0, %s81
    %s103 = sphi 0, %s105
    %s106 = sphi 0, %s103
    %s107 = sphi 0, %s106
    %s123 = sphi 0, %s107
  $region4: #{conv_transpose3d_pallas.1} parent=0 // loop_header_branch
    %12 = sbr.rel (%p10) target = $region8
  $region5: #{conv_transpose3d_pallas.1} parent=0 // loop_body
    %s14 = ssub.s32 %s9, 1
    %s15 = ssub.s32 %s9, 2
    %s22 = sadd.s32 1, %s17
    %p23 = scmp.ge.s32.totalorder %s22, 1
    %s24 = scalar_select %p23, 0, %s22
    %s25 = sadd.s32 1, %s16
    %s26 = scalar_select %p23, %s25, %s16
    %p27 = scmp.ge.s32.totalorder %s26, 2
    %s28 = scalar_select %p27, 0, %s26
    %s29 = ssub.s32 %s16, %s28
    %s30 = ssub.s32 %s17, %s24
    %s31 = sor.u32 %s29, %s30
    %p32 = scmp.eq.s32.totalorder %s31, 0
    %s34 = sadd.s32 %s33, 1
    %s35 = scalar_select %p32, %s33, %s34
    %p38 = pneg %p32
    %p39 = scmp.eq.s32.totalorder %s9, 1
    %p40 = por %p38, %p39
    %p41 = scmp.ne.s32.totalorder %s33, %s36
    %p42 = scmp.eq.s32.totalorder %s9, 0
    %p43 = por %p41, %p42
    %p44 = scmp.ne.s32.totalorder %s33, %s36
    %p45 = scmp.eq.s32.totalorder %s14, 1
    %p46 = por %p44, %p45
    %p47 = scmp.ne.s32.totalorder %s36, %s37
    %p48 = scmp.eq.s32.totalorder %s14, 0
    %p49 = por %p47, %p48
    %p50 = scmp.ne.s32.totalorder %s36, %s37
    %p51 = scmp.eq.s32.totalorder %s15, 1
    %p52 = por %p50, %p51
    %p54 = scmp.ne.s32.totalorder %s37, %s53
    %p55 = scmp.eq.s32.totalorder %s15, 0
    %p56 = por %p54, %p55
    %s58 = sadd.s32 %s57, 1
    %p61 = scmp.eq.s32.totalorder %s9, 1
    %p62 = scmp.ne.s32.totalorder %s57, %s59
    %p63 = scmp.eq.s32.totalorder %s9, 0
    %p64 = por %p62, %p63
    %p65 = scmp.ne.s32.totalorder %s57, %s59
    %p66 = scmp.eq.s32.totalorder %s14, 1
    %p67 = por %p65, %p66
    %p68 = scmp.ne.s32.totalorder %s59, %s60
    %p69 = scmp.eq.s32.totalorder %s14, 0
    %p70 = por %p68, %p69
    %p71 = scmp.ne.s32.totalorder %s59, %s60
    %p72 = scmp.eq.s32.totalorder %s15, 1
    %p73 = por %p71, %p72
    %p75 = scmp.ne.s32.totalorder %s60, %s74
    %p76 = scmp.eq.s32.totalorder %s15, 0
    %p77 = por %p75, %p76
    %s79 = sadd.s32 %s78, 1
    %p82 = scmp.eq.s32.totalorder %s9, 1
    %p83 = scmp.ne.s32.totalorder %s78, %s80
    %p84 = scmp.eq.s32.totalorder %s9, 0
    %p85 = por %p83, %p84
    %p86 = scmp.ne.s32.totalorder %s78, %s80
    %p87 = scmp.eq.s32.totalorder %s14, 1
    %p88 = por %p86, %p87
    %p89 = scmp.ne.s32.totalorder %s80, %s81
    %p90 = scmp.eq.s32.totalorder %s14, 0
    %p91 = por %p89, %p90
    %p92 = scmp.ne.s32.totalorder %s80, %s81
    %p93 = scmp.eq.s32.totalorder %s15, 1
    %p94 = por %p92, %p93
    %p96 = scmp.ne.s32.totalorder %s81, %s95
    %p97 = scmp.eq.s32.totalorder %s15, 0
    %p98 = por %p96, %p97
    %s99 = ssub.s32 %s16, %s28
    %s100 = ssub.s32 %s17, %s24
    %s101 = sor.u32 %s99, %s100
    %p102 = scmp.eq.s32.totalorder %s101, 0
    %s104 = sadd.s32 %s103, 1
    %s105 = scalar_select %p102, %s103, %s104
    %p108 = pneg %p102
    %p109 = scmp.eq.s32.totalorder %s9, 1
    %p110 = por %p108, %p109
    %p111 = scmp.ne.s32.totalorder %s103, %s106
    %p112 = scmp.eq.s32.totalorder %s9, 0
    %p113 = por %p111, %p112
    %p114 = scmp.ne.s32.totalorder %s103, %s106
    %p115 = scmp.eq.s32.totalorder %s14, 1
    %p116 = por %p114, %p115
    %p117 = scmp.ne.s32.totalorder %s106, %s107
    %p118 = scmp.eq.s32.totalorder %s14, 0
    %p119 = por %p117, %p118
    %p120 = scmp.ne.s32.totalorder %s106, %s107
    %p121 = scmp.eq.s32.totalorder %s15, 1
    %p122 = por %p120, %p121
    %p124 = scmp.ne.s32.totalorder %s107, %s123
    %p125 = scmp.eq.s32.totalorder %s15, 0
    %p126 = por %p124, %p125
    %p127 = scmp.le.s32.totalorder 1, %s9
    %p128 = scmp.lt.s32.totalorder %s9, 3
    %p129 = pnand %p127, %p128
    %p130 = pneg %p129
    // Predicated region
    $region9: #{conv_transpose3d_pallas.1} parent=5 // pred_check
      _
    $region10: #{conv_transpose3d_pallas.1} parent=5 // pred_check_branch
      %132 = sbr.rel (%p129) target = $region12
    $region11: #{conv_transpose3d_pallas.1} parent=5 // pred_region
      %s133 = ssub.s32 %s9, 1
      // Predicated region
      $region13: #{conv_transpose3d_pallas.1} parent=11 // pred_check
        %p134 = pneg %p70
      $region14: #{conv_transpose3d_pallas.1} parent=11 // pred_check_branch
        %136 = sbr.rel (%p134) target = $region16
      $region15: #{conv_transpose3d_pallas.1} parent=11 // pred_region
        _
      $region16: #{conv_transpose3d_pallas.1} parent=11 // pred_fallthru
        _
      // Predicated region
      $region17: #{conv_transpose3d_pallas.1} parent=11 // pred_check
        %p137 = pneg %p91
      $region18: #{conv_transpose3d_pallas.1} parent=11 // pred_check_branch
        %139 = sbr.rel (%p137) target = $region20
      $region19: #{conv_transpose3d_pallas.1} parent=11 // pred_region
        _
      $region20: #{conv_transpose3d_pallas.1} parent=11 // pred_fallthru
        _
    $region12: #{conv_transpose3d_pallas.1} parent=5 // pred_fallthru
      _
    %p140 = scmp.lt.s32.totalorder %s9, 2
    // Predicated region
    $region21: #{conv_transpose3d_pallas.1} parent=5 // pred_check
      %p141 = pneg %p140
    $region22: #{conv_transpose3d_pallas.1} parent=5 // pred_check_branch
      %143 = sbr.rel (%p141) target = $region24
    $region23: #{conv_transpose3d_pallas.1} parent=5 // pred_region
      // Predicated region
      $region25: #{conv_transpose3d_pallas.1} parent=23 // pred_check
        %p144 = pneg %p43
      $region26: #{conv_transpose3d_pallas.1} parent=23 // pred_check_branch
        %146 = sbr.rel (%p144) target = $region28
      $region27: #{conv_transpose3d_pallas.1} parent=23 // pred_region
        %s147 = smul.u32 64, %s17
        %p148 = scmp.lt.s32.totalorder %s16, 1
        %s149 = scalar_select %p148, %s16, 1
        %p150 = scmp.lt.s32.totalorder %s147, 63
        %s151 = scalar_select %p150, %s147, 63
        %s152 = smul.addr %s149, 64
        %s153 = sadd.s32 %s151, %s152
        %s154 = smul.addr %s153, 4
        %s155 = scalar_lea.vmem %s0, %s154
        %s156 = smul.u32 64, %s17
      $region28: #{conv_transpose3d_pallas.1} parent=23 // pred_fallthru
        _
    $region24: #{conv_transpose3d_pallas.1} parent=5 // pred_fallthru
      _
    %p157 = scmp.le.s32.totalorder 1, %s9
    %p158 = scmp.lt.s32.totalorder %s9, 3
    %p159 = pnand %p157, %p158
    %p160 = pneg %p159
    // Predicated region
    $region29: #{conv_transpose3d_pallas.1} parent=5 // pred_check
      _
    $region30: #{conv_transpose3d_pallas.1} parent=5 // pred_check_branch
      %162 = sbr.rel (%p159) target = $region32
    $region31: #{conv_transpose3d_pallas.1} parent=5 // pred_region
      %s163 = ssub.s32 %s9, 1
      %s164 = smul.u32 64, %s19
      %p165 = scmp.lt.s32.totalorder %s18, 1
      %s166 = scalar_select %p165, %s18, 1
      %p167 = scmp.lt.s32.totalorder %s164, 63
      %s168 = scalar_select %p167, %s164, 63
      %s169 = smul.addr %s166, 64
      %s170 = sadd.s32 %s168, %s169
      %s171 = smul.addr %s170, 4
      %s172 = scalar_lea.vmem %s0, %s171
      %p173 = pneg %p49
      %p174 = pneg %p46
      %p175 = pneg %p70
      %p176 = pneg %p67
      %p177 = pneg %p91
      %p178 = pneg %p88
      %p179 = pneg %p119
      %p180 = pneg %p116
      %s181 = smul.u32 64, %s19
      %p182 = scmp.lt.s32.totalorder %s18, 1
      %s183 = scalar_select %p182, %s18, 1
      %p184 = scmp.lt.s32.totalorder %s181, 63
      %s185 = scalar_select %p184, %s181, 63
      %s186 = smul.addr %s183, 64
      %s187 = sadd.s32 %s185, %s186
      %s188 = smul.addr %s187, 8
      %s189 = scalar_lea.vmem %s3, %s188
      %s190 = smul.u32 64, %s19
      %p191 = scmp.lt.s32.totalorder %s18, 1
      %s192 = scalar_select %p191, %s18, 1
      %p193 = scmp.lt.s32.totalorder %s190, 63
      %s194 = scalar_select %p193, %s190, 63
      %s195 = smul.addr %s192, 64
      %s196 = sadd.s32 %s194, %s195
      %s197 = smul.addr %s196, 4
      %s198 = scalar_lea.vmem %s0, %s197
      %s199 = smul.u32 64, %s19
      %s200 = smul.u32 64, %s19
      %p201 = scmp.lt.s32.totalorder %s18, 1
      %s202 = scalar_select %p201, %s18, 1
      %p203 = scmp.lt.s32.totalorder %s200, 63
      %s204 = scalar_select %p203, %s200, 63
      %s205 = smul.addr %s202, 64
      %s206 = sadd.s32 %s204, %s205
      %s207 = smul.addr %s206, 8
      %s208 = scalar_lea.vmem %s3, %s207
      %s209 = smul.u32 64, %s19
      %v211 = vld [vmem:[%s198] sm:$0xf]
      %v212 = vld [vmem:[%s198 + $0x4] sm:$0xf]
      %v213 = vld [vmem:[%s198 + $0x8] sm:$0xf]
      %v214 = vld [vmem:[%s198 + $0xc] sm:$0xf]
      %v215 = vld [vmem:[%s198 + $0x10] sm:$0xf]
      %v216 = vld [vmem:[%s198 + $0x14] sm:$0xf]
      %v217 = vld [vmem:[%s198 + $0x18] sm:$0xf]
      %v218 = vld [vmem:[%s198 + $0x1c] sm:$0xf]
      %v219 = vld [vmem:[%s198 + $0x20] sm:$0xf]
      %v220 = vld [vmem:[%s198 + $0x24] sm:$0xf]
      %v221 = vld [vmem:[%s198 + $0x28] sm:$0xf]
      %v222 = vld [vmem:[%s198 + $0x2c] sm:$0xf]
      %v223 = vld [vmem:[%s198 + $0x30] sm:$0xf]
      %v224 = vld [vmem:[%s198 + $0x34] sm:$0xf]
      %v225 = vld [vmem:[%s198 + $0x38] sm:$0xf]
      %v226 = vld [vmem:[%s198 + $0x3c] sm:$0xf]
      %v227 = vld [vmem:[%s198 + $0x40] sm:$0xf]
      %v228 = vld [vmem:[%s198 + $0x44] sm:$0xf]
      %v229 = vld [vmem:[%s198 + $0x48] sm:$0xf]
      %v230 = vld [vmem:[%s198 + $0x4c] sm:$0xf]
      %v231 = vld [vmem:[%s198 + $0x50] sm:$0xf]
      %v232 = vld [vmem:[%s198 + $0x54] sm:$0xf]
      %v233 = vld [vmem:[%s198 + $0x58] sm:$0xf]
      %v234 = vld [vmem:[%s198 + $0x5c] sm:$0xf]
      %v235 = vld [vmem:[%s198 + $0x60] sm:$0xf]
      %v236 = vld [vmem:[%s198 + $0x64] sm:$0xf]
      %v237 = vld [vmem:[%s198 + $0x68] sm:$0xf]
      %v238 = vld [vmem:[%s198 + $0x6c] sm:$0xf]
      %v239 = vld [vmem:[%s198 + $0x70] sm:$0xf]
      %v240 = vld [vmem:[%s198 + $0x74] sm:$0xf]
      %v241 = vld [vmem:[%s198 + $0x78] sm:$0xf]
      %v242 = vld [vmem:[%s198 + $0x7c] sm:$0xf]
      %v243 = vld [vmem:[%s198 + $0x80] sm:$0xf]
      %v244 = vld [vmem:[%s198 + $0x84] sm:$0xf]
      %v245 = vld [vmem:[%s198 + $0x88] sm:$0xf]
      %v246 = vld [vmem:[%s198 + $0x8c] sm:$0xf]
      %v247 = vld [vmem:[%s198 + $0x90] sm:$0xf]
      %v248 = vld [vmem:[%s198 + $0x94] sm:$0xf]
      %v249 = vld [vmem:[%s198 + $0x98] sm:$0xf]
      %v250 = vld [vmem:[%s198 + $0x9c] sm:$0xf]
      %v251 = vld [vmem:[%s198 + $0xa0] sm:$0xf]
      %v252 = vld [vmem:[%s198 + $0xa4] sm:$0xf]
      %v253 = vld [vmem:[%s198 + $0xa8] sm:$0xf]
      %v254 = vld [vmem:[%s198 + $0xac] sm:$0xf]
      %v255 = vld [vmem:[%s198 + $0xb0] sm:$0xf]
      %v256 = vld [vmem:[%s198 + $0xb4] sm:$0xf]
      %v257 = vld [vmem:[%s198 + $0xb8] sm:$0xf]
      %v258 = vld [vmem:[%s198 + $0xbc] sm:$0xf]
      %v259 = vld [vmem:[%s198 + $0xc0] sm:$0xf]
      %v260 = vld [vmem:[%s198 + $0xc4] sm:$0xf]
      %v261 = vld [vmem:[%s198 + $0xc8] sm:$0xf]
      %v262 = vld [vmem:[%s198 + $0xcc] sm:$0xf]
      %v263 = vld [vmem:[%s198 + $0xd0] sm:$0xf]
      %v264 = vld [vmem:[%s198 + $0xd4] sm:$0xf]
      %v265 = vld [vmem:[%s198 + $0xd8] sm:$0xf]
      %v266 = vld [vmem:[%s198 + $0xdc] sm:$0xf]
      %v267 = vld [vmem:[%s198 + $0xe0] sm:$0xf]
      %v268 = vld [vmem:[%s198 + $0xe4] sm:$0xf]
      %v269 = vld [vmem:[%s198 + $0xe8] sm:$0xf]
      %v270 = vld [vmem:[%s198 + $0xec] sm:$0xf]
      %v271 = vld [vmem:[%s198 + $0xf0] sm:$0xf]
      %v272 = vld [vmem:[%s198 + $0xf4] sm:$0xf]
      %v273 = vld [vmem:[%s198 + $0xf8] sm:$0xf]
      %v274 = vld [vmem:[%s198 + $0xfc] sm:$0xf]
      %v275 = vld [vmem:[%s1] sm:$0xf]
      %v276 = vld [vmem:[%s1 + $0x4] sm:$0xf]
      %v277 = vld [vmem:[%s1 + $0x8] sm:$0xf]
      %v278 = vld [vmem:[%s1 + $0xc] sm:$0xf]
      %v279 = vld [vmem:[%s2] sm:$0x1]
      %v281 = vlaneseq
      %v282 = vshrl.u32 %v281, 7
      %v283 = vsub.s32 0, %v282
      %v284 = vrot.slane %v279, %v283
      %v350 = vunpack.c.l.b16 %v211
      %v351 = vunpack.c.l.b16 %v212
      %v352 = vunpack.c.l.b16 %v213
      %v353 = vunpack.c.l.b16 %v214
      %v354 = vunpack.c.l.b16 %v215
      %v355 = vunpack.c.l.b16 %v216
      %v356 = vunpack.c.l.b16 %v217
      %v357 = vunpack.c.l.b16 %v218
      %v358 = vunpack.c.l.b16 %v219
      %v359 = vunpack.c.l.b16 %v220
      %v360 = vunpack.c.l.b16 %v221
      %v361 = vunpack.c.l.b16 %v222
      %v362 = vunpack.c.l.b16 %v223
      %v363 = vunpack.c.l.b16 %v224
      %v364 = vunpack.c.l.b16 %v225
      %v365 = vunpack.c.l.b16 %v226
      %v366 = vunpack.c.l.b16 %v227
      %v367 = vunpack.c.l.b16 %v228
      %v368 = vunpack.c.l.b16 %v229
      %v369 = vunpack.c.l.b16 %v230
      %v370 = vunpack.c.l.b16 %v231
      %v371 = vunpack.c.l.b16 %v232
      %v372 = vunpack.c.l.b16 %v233
      %v373 = vunpack.c.l.b16 %v234
      %v374 = vunpack.c.l.b16 %v235
      %v375 = vunpack.c.l.b16 %v236
      %v376 = vunpack.c.l.b16 %v237
      %v377 = vunpack.c.l.b16 %v238
      %v378 = vunpack.c.l.b16 %v239
      %v379 = vunpack.c.l.b16 %v240
      %v380 = vunpack.c.l.b16 %v241
      %v381 = vunpack.c.l.b16 %v242
      %v382 = vunpack.c.l.b16 %v243
      %v383 = vunpack.c.l.b16 %v244
      %v384 = vunpack.c.l.b16 %v245
      %v385 = vunpack.c.l.b16 %v246
      %v386 = vunpack.c.l.b16 %v247
      %v387 = vunpack.c.l.b16 %v248
      %v388 = vunpack.c.l.b16 %v249
      %v389 = vunpack.c.l.b16 %v250
      %v390 = vunpack.c.l.b16 %v251
      %v391 = vunpack.c.l.b16 %v252
      %v392 = vunpack.c.l.b16 %v253
      %v393 = vunpack.c.l.b16 %v254
      %v394 = vunpack.c.l.b16 %v255
      %v395 = vunpack.c.l.b16 %v256
      %v396 = vunpack.c.l.b16 %v257
      %v397 = vunpack.c.l.b16 %v258
      %v398 = vunpack.c.l.b16 %v259
      %v399 = vunpack.c.l.b16 %v260
      %v400 = vunpack.c.l.b16 %v261
      %v401 = vunpack.c.l.b16 %v262
      %v402 = vunpack.c.l.b16 %v263
      %v403 = vunpack.c.l.b16 %v264
      %v404 = vunpack.c.l.b16 %v265
      %v405 = vunpack.c.l.b16 %v266
      %v406 = vunpack.c.l.b16 %v267
      %v407 = vunpack.c.l.b16 %v268
      %v408 = vunpack.c.l.b16 %v269
      %v409 = vunpack.c.l.b16 %v270
      %v410 = vunpack.c.l.b16 %v271
      %v411 = vunpack.c.l.b16 %v272
      %v412 = vunpack.c.l.b16 %v273
      %v413 = vunpack.c.l.b16 %v274
      %v414 = vpack.c.b16 %v351, %v350
      %v415 = vpack.c.b16 %v353, %v352
      %v416 = vpack.c.b16 %v355, %v354
      %v417 = vpack.c.b16 %v357, %v356
      %v418 = vpack.c.b16 %v359, %v358
      %v419 = vpack.c.b16 %v361, %v360
      %v420 = vpack.c.b16 %v363, %v362
      %v421 = vpack.c.b16 %v365, %v364
      %v422 = vpack.c.b16 %v367, %v366
      %v423 = vpack.c.b16 %v369, %v368
      %v424 = vpack.c.b16 %v371, %v370
      %v425 = vpack.c.b16 %v373, %v372
      %v426 = vpack.c.b16 %v375, %v374
      %v427 = vpack.c.b16 %v377, %v376
      %v428 = vpack.c.b16 %v379, %v378
      %v429 = vpack.c.b16 %v381, %v380
      %v430 = vpack.c.b16 %v383, %v382
      %v431 = vpack.c.b16 %v385, %v384
      %v432 = vpack.c.b16 %v387, %v386
      %v433 = vpack.c.b16 %v389, %v388
      %v434 = vpack.c.b16 %v391, %v390
      %v435 = vpack.c.b16 %v393, %v392
      %v436 = vpack.c.b16 %v395, %v394
      %v437 = vpack.c.b16 %v397, %v396
      %v438 = vpack.c.b16 %v399, %v398
      %v439 = vpack.c.b16 %v401, %v400
      %v440 = vpack.c.b16 %v403, %v402
      %v441 = vpack.c.b16 %v405, %v404
      %v442 = vpack.c.b16 %v407, %v406
      %v443 = vpack.c.b16 %v409, %v408
      %v444 = vpack.c.b16 %v411, %v410
      %v445 = vpack.c.b16 %v413, %v412
      %v450 = vunpack.c.l.b16 %v275
      %v451 = vunpack.c.l.b16 %v276
      %v452 = vunpack.c.l.b16 %v277
      %v453 = vunpack.c.l.b16 %v278
      %v454 = vpack.c.b16 %v451, %v450
      %v455 = vpack.c.b16 %v453, %v452
      %vm458 = vcmask 261120
      %v460 = vsel %vm458, %v414, 0
      %v463 = vsel %vm458, %v415, 0
      %v466 = vsel %vm458, %v416, 0
      %v469 = vsel %vm458, %v417, 0
      %v472 = vsel %vm458, %v418, 0
      %v475 = vsel %vm458, %v419, 0
      %v478 = vsel %vm458, %v420, 0
      %v481 = vsel %vm458, %v421, 0
      %v484 = vsel %vm458, %v422, 0
      %v487 = vsel %vm458, %v423, 0
      %v490 = vsel %vm458, %v424, 0
      %v493 = vsel %vm458, %v425, 0
      %v496 = vsel %vm458, %v426, 0
      %v499 = vsel %vm458, %v427, 0
      %v502 = vsel %vm458, %v428, 0
      %v505 = vsel %vm458, %v429, 0
      %v508 = vsel %vm458, %v430, 0
      %v511 = vsel %vm458, %v431, 0
      %v514 = vsel %vm458, %v432, 0
      %v517 = vsel %vm458, %v433, 0
      %v520 = vsel %vm458, %v434, 0
      %v523 = vsel %vm458, %v435, 0
      %v526 = vsel %vm458, %v436, 0
      %v529 = vsel %vm458, %v437, 0
      %v532 = vsel %vm458, %v438, 0
      %v535 = vsel %vm458, %v439, 0
      %v538 = vsel %vm458, %v440, 0
      %v541 = vsel %vm458, %v441, 0
      %v544 = vsel %vm458, %v442, 0
      %v547 = vsel %vm458, %v443, 0
      %v550 = vsel %vm458, %v444, 0
      %v553 = vsel %vm458, %v445, 0
      %555 = vmatprep.subr.bf16.mxu0 0
      %556 = vmatpush1.bf16.msra.mxu0 %v454
      %557 = vmatprep.subr.bf16.mxu0 0
      %558 = vmatpush1.bf16.msra.mxu0 %v455
      %559 = vmatprep.subr.bf16.mxu0 0
      %560 = vmatpush1.bf16.msra.mxu0 0
      %561 = vmatprep.subr.bf16.mxu0 0
      %562 = vmatpush1.bf16.msra.mxu0 0
      %563 = vmatprep.subr.bf16.mxu0 0
      %564 = vmatpush1.bf16.msra.mxu0 0
      %565 = vmatprep.subr.bf16.mxu0 0
      %566 = vmatpush1.bf16.msra.mxu0 0
      %567 = vmatprep.subr.bf16.mxu0 0
      %568 = vmatpush1.bf16.msra.mxu0 0
      %569 = vmatprep.subr.bf16.mxu0 0
      %570 = vmatpush1.bf16.msra.mxu0 0
      %571 = vmatprep.subr.bf16.mxu0 0
      %572 = vmatpush1.bf16.msra.mxu0 0
      %573 = vmatprep.subr.bf16.mxu0 0
      %574 = vmatpush1.bf16.msra.mxu0 0
      %575 = vmatprep.subr.bf16.mxu0 0
      %576 = vmatpush1.bf16.msra.mxu0 0
      %577 = vmatprep.subr.bf16.mxu0 0
      %578 = vmatpush1.bf16.msra.mxu0 0
      %579 = vmatprep.subr.bf16.mxu0 0
      %580 = vmatpush1.bf16.msra.mxu0 0
      %581 = vmatprep.subr.bf16.mxu0 0
      %582 = vmatpush1.bf16.msra.mxu0 0
      %583 = vmatprep.subr.bf16.mxu0 0
      %584 = vmatpush1.bf16.msra.mxu0 0
      %585 = vmatprep.subr.bf16.mxu0 0
      %586 = vmatpush1.bf16.msra.mxu0 0
      %587 = vmatprep.mubr.bf16.mxu0 0
      %588 = vmatmul.mubr.bf16.gmra.mrb[0].mxu0 %v460
      %v589 = vpop.f32.mrb[0].mxu0
      %v590 = vadd.f32 %v284, %v589
      %v591 = vpop.f32.mrb[0].mxu0
      %v592 = vpop.f32.mrb[0].mxu0
      %v593 = vadd.f32 %v284, %v592
      %v594 = vpop.f32.mrb[0].mxu0
      %595 = vmatprep.mubr.bf16.mxu0 0
      %596 = vmatmul.mubr.bf16.gmra.mrb[0].mxu0 %v463
      %v597 = vpop.f32.mrb[0].mxu0
      %v598 = vadd.f32 %v284, %v597
      %v599 = vpop.f32.mrb[0].mxu0
      %v600 = vpop.f32.mrb[0].mxu0
      %v601 = vadd.f32 %v284, %v600
      %v602 = vpop.f32.mrb[0].mxu0
      %603 = vmatprep.mubr.bf16.mxu0 0
      %604 = vmatmul.mubr.bf16.gmra.mrb[0].mxu0 %v466
      %v605 = vpop.f32.mrb[0].mxu0
      %v606 = vadd.f32 %v284, %v605
      %v607 = vpop.f32.mrb[0].mxu0
      %v608 = vpop.f32.mrb[0].mxu0
      %v609 = vadd.f32 %v284, %v608
      %v610 = vpop.f32.mrb[0].mxu0
      %611 = vmatprep.mubr.bf16.mxu0 0
      %612 = vmatmul.mubr.bf16.gmra.mrb[0].mxu0 %v469
      %v613 = vpop.f32.mrb[0].mxu0
      %v614 = vadd.f32 %v284, %v613
      %v615 = vpop.f32.mrb[0].mxu0
      %v616 = vpop.f32.mrb[0].mxu0
      %v617 = vadd.f32 %v284, %v616
      %v618 = vpop.f32.mrb[0].mxu0
      %619 = vmatprep.mubr.bf16.mxu0 0
      %620 = vmatmul.mubr.bf16.gmra.mrb[0].mxu0 %v472
      %v621 = vpop.f32.mrb[0].mxu0
      %v622 = vadd.f32 %v284, %v621
      %v623 = vpop.f32.mrb[0].mxu0
      %v624 = vpop.f32.mrb[0].mxu0
      %v625 = vadd.f32 %v284, %v624
      %v626 = vpop.f32.mrb[0].mxu0
      %627 = vmatprep.mubr.bf16.mxu0 0
      %628 = vmatmul.mubr.bf16.gmra.mrb[0].mxu0 %v475
      %v629 = vpop.f32.mrb[0].mxu0
      %v630 = vadd.f32 %v284, %v629
      %v631 = vpop.f32.mrb[0].mxu0
      %v632 = vpop.f32.mrb[0].mxu0
      %v633 = vadd.f32 %v284, %v632
      %v634 = vpop.f32.mrb[0].mxu0
      %635 = vmatprep.mubr.bf16.mxu0 0
      %636 = vmatmul.mubr.bf16.gmra.mrb[0].mxu0 %v478
      %v637 = vpop.f32.mrb[0].mxu0
      %v638 = vadd.f32 %v284, %v637
      %v639 = vpop.f32.mrb[0].mxu0
      %v640 = vpop.f32.mrb[0].mxu0
      %v641 = vadd.f32 %v284, %v640
      %v642 = vpop.f32.mrb[0].mxu0
      %643 = vmatprep.mubr.bf16.mxu0 0
      %644 = vmatmul.mubr.bf16.gmra.mrb[0].mxu0 %v481
      %v645 = vpop.f32.mrb[0].mxu0
      %v646 = vadd.f32 %v284, %v645
      %v647 = vpop.f32.mrb[0].mxu0
      %v648 = vpop.f32.mrb[0].mxu0
      %v649 = vadd.f32 %v284, %v648
      %v650 = vpop.f32.mrb[0].mxu0
      %651 = vmatprep.mubr.bf16.mxu0 0
      %652 = vmatmul.mubr.bf16.gmra.mrb[0].mxu0 %v484
      %v653 = vpop.f32.mrb[0].mxu0
      %v654 = vadd.f32 %v284, %v653
      %v655 = vpop.f32.mrb[0].mxu0
      %v656 = vpop.f32.mrb[0].mxu0
      %v657 = vadd.f32 %v284, %v656
      %v658 = vpop.f32.mrb[0].mxu0
      %659 = vmatprep.mubr.bf16.mxu0 0
      %660 = vmatmul.mubr.bf16.gmra.mrb[0].mxu0 %v487
      %v661 = vpop.f32.mrb[0].mxu0
      %v662 = vadd.f32 %v284, %v661
      %v663 = vpop.f32.mrb[0].mxu0
      %v664 = vpop.f32.mrb[0].mxu0
      %v665 = vadd.f32 %v284, %v664
      %v666 = vpop.f32.mrb[0].mxu0
      %667 = vmatprep.mubr.bf16.mxu0 0
      %668 = vmatmul.mubr.bf16.gmra.mrb[0].mxu0 %v490
      %v669 = vpop.f32.mrb[0].mxu0
      %v670 = vadd.f32 %v284, %v669
      %v671 = vpop.f32.mrb[0].mxu0
      %v672 = vpop.f32.mrb[0].mxu0
      %v673 = vadd.f32 %v284, %v672
      %v674 = vpop.f32.mrb[0].mxu0
      %675 = vmatprep.mubr.bf16.mxu0 0
      %676 = vmatmul.mubr.bf16.gmra.mrb[0].mxu0 %v493
      %v677 = vpop.f32.mrb[0].mxu0
      %v678 = vadd.f32 %v284, %v677
      %v679 = vpop.f32.mrb[0].mxu0
      %v680 = vpop.f32.mrb[0].mxu0
      %v681 = vadd.f32 %v284, %v680
      %v682 = vpop.f32.mrb[0].mxu0
      %683 = vmatprep.mubr.bf16.mxu0 0
      %684 = vmatmul.mubr.bf16.gmra.mrb[0].mxu0 %v496
      %v685 = vpop.f32.mrb[0].mxu0
      %v686 = vadd.f32 %v284, %v685
      %v687 = vpop.f32.mrb[0].mxu0
      %v688 = vpop.f32.mrb[0].mxu0
      %v689 = vadd.f32 %v284, %v688
      %v690 = vpop.f32.mrb[0].mxu0
      %691 = vmatprep.mubr.bf16.mxu0 0
      %692 = vmatmul.mubr.bf16.gmra.mrb[0].mxu0 %v499
      %v693 = vpop.f32.mrb[0].mxu0
      %v694 = vadd.f32 %v284, %v693
      %v695 = vpop.f32.mrb[0].mxu0
      %v696 = vpop.f32.mrb[0].mxu0
      %v697 = vadd.f32 %v284, %v696
      %v698 = vpop.f32.mrb[0].mxu0
      %699 = vmatprep.mubr.bf16.mxu0 0
      %700 = vmatmul.mubr.bf16.gmra.mrb[0].mxu0 %v502
      %v701 = vpop.f32.mrb[0].mxu0
      %v702 = vadd.f32 %v284, %v701
      %v703 = vpop.f32.mrb[0].mxu0
      %v704 = vpop.f32.mrb[0].mxu0
      %v705 = vadd.f32 %v284, %v704
      %v706 = vpop.f32.mrb[0].mxu0
      %707 = vmatprep.mubr.bf16.mxu0 0
      %708 = vmatmul.mubr.bf16.gmra.mrb[0].mxu0 %v505
      %v709 = vpop.f32.mrb[0].mxu0
      %v710 = vadd.f32 %v284, %v709
      %v711 = vpop.f32.mrb[0].mxu0
      %v712 = vpop.f32.mrb[0].mxu0
      %v713 = vadd.f32 %v284, %v712
      %v714 = vpop.f32.mrb[0].mxu0
      %715 = vmatprep.mubr.bf16.mxu0 0
      %716 = vmatmul.mubr.bf16.gmra.mrb[0].mxu0 %v508
      %v717 = vpop.f32.mrb[0].mxu0
      %v718 = vadd.f32 %v284, %v717
      %v719 = vpop.f32.mrb[0].mxu0
      %v720 = vpop.f32.mrb[0].mxu0
      %v721 = vadd.f32 %v284, %v720
      %v722 = vpop.f32.mrb[0].mxu0
      %723 = vmatprep.mubr.bf16.mxu0 0
      %724 = vmatmul.mubr.bf16.gmra.mrb[0].mxu0 %v511
      %v725 = vpop.f32.mrb[0].mxu0
      %v726 = vadd.f32 %v284, %v725
      %v727 = vpop.f32.mrb[0].mxu0
      %v728 = vpop.f32.mrb[0].mxu0
      %v729 = vadd.f32 %v284, %v728
      %v730 = vpop.f32.mrb[0].mxu0
      %731 = vmatprep.mubr.bf16.mxu0 0
      %732 = vmatmul.mubr.bf16.gmra.mrb[0].mxu0 %v514
      %v733 = vpop.f32.mrb[0].mxu0
      %v734 = vadd.f32 %v284, %v733
      %v735 = vpop.f32.mrb[0].mxu0
      %v736 = vpop.f32.mrb[0].mxu0
      %v737 = vadd.f32 %v284, %v736
      %v738 = vpop.f32.mrb[0].mxu0
      %739 = vmatprep.mubr.bf16.mxu0 0
      %740 = vmatmul.mubr.bf16.gmra.mrb[0].mxu0 %v517
      %v741 = vpop.f32.mrb[0].mxu0
      %v742 = vadd.f32 %v284, %v741
      %v743 = vpop.f32.mrb[0].mxu0
      %v744 = vpop.f32.mrb[0].mxu0
      %v745 = vadd.f32 %v284, %v744
      %v746 = vpop.f32.mrb[0].mxu0
      %747 = vmatprep.mubr.bf16.mxu0 0
      %748 = vmatmul.mubr.bf16.gmra.mrb[0].mxu0 %v520
      %v749 = vpop.f32.mrb[0].mxu0
      %v750 = vadd.f32 %v284, %v749
      %v751 = vpop.f32.mrb[0].mxu0
      %v752 = vpop.f32.mrb[0].mxu0
      %v753 = vadd.f32 %v284, %v752
      %v754 = vpop.f32.mrb[0].mxu0
      %755 = vmatprep.mubr.bf16.mxu0 0
      %756 = vmatmul.mubr.bf16.gmra.mrb[0].mxu0 %v523
      %v757 = vpop.f32.mrb[0].mxu0
      %v758 = vadd.f32 %v284, %v757
      %v759 = vpop.f32.mrb[0].mxu0
      %v760 = vpop.f32.mrb[0].mxu0
      %v761 = vadd.f32 %v284, %v760
      %v762 = vpop.f32.mrb[0].mxu0
      %763 = vmatprep.mubr.bf16.mxu0 0
      %764 = vmatmul.mubr.bf16.gmra.mrb[0].mxu0 %v526
      %v765 = vpop.f32.mrb[0].mxu0
      %v766 = vadd.f32 %v284, %v765
      %v767 = vpop.f32.mrb[0].mxu0
      %v768 = vpop.f32.mrb[0].mxu0
      %v769 = vadd.f32 %v284, %v768
      %v770 = vpop.f32.mrb[0].mxu0
      %771 = vmatprep.mubr.bf16.mxu0 0
      %772 = vmatmul.mubr.bf16.gmra.mrb[0].mxu0 %v529
      %v773 = vpop.f32.mrb[0].mxu0
      %v774 = vadd.f32 %v284, %v773
      %v775 = vpop.f32.mrb[0].mxu0
      %v776 = vpop.f32.mrb[0].mxu0
      %v777 = vadd.f32 %v284, %v776
      %v778 = vpop.f32.mrb[0].mxu0
      %779 = vmatprep.mubr.bf16.mxu0 0
      %780 = vmatmul.mubr.bf16.gmra.mrb[0].mxu0 %v532
      %v781 = vpop.f32.mrb[0].mxu0
      %v782 = vadd.f32 %v284, %v781
      %v783 = vpop.f32.mrb[0].mxu0
      %v784 = vpop.f32.mrb[0].mxu0
      %v785 = vadd.f32 %v284, %v784
      %v786 = vpop.f32.mrb[0].mxu0
      %787 = vmatprep.mubr.bf16.mxu0 0
      %788 = vmatmul.mubr.bf16.gmra.mrb[0].mxu0 %v535
      %v789 = vpop.f32.mrb[0].mxu0
      %v790 = vadd.f32 %v284, %v789
      %v791 = vpop.f32.mrb[0].mxu0
      %v792 = vpop.f32.mrb[0].mxu0
      %v793 = vadd.f32 %v284, %v792
      %v794 = vpop.f32.mrb[0].mxu0
      %795 = vmatprep.mubr.bf16.mxu0 0
      %796 = vmatmul.mubr.bf16.gmra.mrb[0].mxu0 %v538
      %v797 = vpop.f32.mrb[0].mxu0
      %v798 = vadd.f32 %v284, %v797
      %v799 = vpop.f32.mrb[0].mxu0
      %v800 = vpop.f32.mrb[0].mxu0
      %v801 = vadd.f32 %v284, %v800
      %v802 = vpop.f32.mrb[0].mxu0
      %803 = vmatprep.mubr.bf16.mxu0 0
      %804 = vmatmul.mubr.bf16.gmra.mrb[0].mxu0 %v541
      %v805 = vpop.f32.mrb[0].mxu0
      %v806 = vadd.f32 %v284, %v805
      %v807 = vpop.f32.mrb[0].mxu0
      %v808 = vpop.f32.mrb[0].mxu0
      %v809 = vadd.f32 %v284, %v808
      %v810 = vpop.f32.mrb[0].mxu0
      %811 = vmatprep.mubr.bf16.mxu0 0
      %812 = vmatmul.mubr.bf16.gmra.mrb[0].mxu0 %v544
      %v813 = vpop.f32.mrb[0].mxu0
      %v814 = vadd.f32 %v284, %v813
      %v815 = vpop.f32.mrb[0].mxu0
      %v816 = vpop.f32.mrb[0].mxu0
      %v817 = vadd.f32 %v284, %v816
      %v818 = vpop.f32.mrb[0].mxu0
      %819 = vmatprep.mubr.bf16.mxu0 0
      %820 = vmatmul.mubr.bf16.gmra.mrb[0].mxu0 %v547
      %v821 = vpop.f32.mrb[0].mxu0
      %v822 = vadd.f32 %v284, %v821
      %v823 = vpop.f32.mrb[0].mxu0
      %v824 = vpop.f32.mrb[0].mxu0
      %v825 = vadd.f32 %v284, %v824
      %v826 = vpop.f32.mrb[0].mxu0
      %827 = vmatprep.mubr.bf16.mxu0 0
      %828 = vmatmul.mubr.bf16.gmra.mrb[0].mxu0 %v550
      %v829 = vpop.f32.mrb[0].mxu0
      %v830 = vadd.f32 %v284, %v829
      %v831 = vpop.f32.mrb[0].mxu0
      %v832 = vpop.f32.mrb[0].mxu0
      %v833 = vadd.f32 %v284, %v832
      %v834 = vpop.f32.mrb[0].mxu0
      %835 = vmatprep.mubr.bf16.mxu0 0
      %836 = vmatmul.mubr.bf16.gmra.mrb[0].mxu0 %v553
      %v837 = vpop.f32.mrb[0].mxu0
      %v838 = vadd.f32 %v284, %v837
      %v839 = vpop.f32.mrb[0].mxu0
      %v840 = vpop.f32.mrb[0].mxu0
      %v841 = vadd.f32 %v284, %v840
      %v842 = vpop.f32.mrb[0].mxu0
      %843 = vdwg.mxu0
      %844 = vst [vmem:[%s208] sm:$0xff] %v590
      %845 = vst [vmem:[%s208 + $0x8] sm:$0xff] %v593
      %846 = vst [vmem:[%s208 + $0x10] sm:$0xff] %v598
      %847 = vst [vmem:[%s208 + $0x18] sm:$0xff] %v601
      %848 = vst [vmem:[%s208 + $0x20] sm:$0xff] %v606
      %849 = vst [vmem:[%s208 + $0x28] sm:$0xff] %v609
      %850 = vst [vmem:[%s208 + $0x30] sm:$0xff] %v614
      %851 = vst [vmem:[%s208 + $0x38] sm:$0xff] %v617
      %852 = vst [vmem:[%s208 + $0x40] sm:$0xff] %v622
      %853 = vst [vmem:[%s208 + $0x48] sm:$0xff] %v625
      %854 = vst [vmem:[%s208 + $0x50] sm:$0xff] %v630
      %855 = vst [vmem:[%s208 + $0x58] sm:$0xff] %v633
      %856 = vst [vmem:[%s208 + $0x60] sm:$0xff] %v638
      %857 = vst [vmem:[%s208 + $0x68] sm:$0xff] %v641
      %858 = vst [vmem:[%s208 + $0x70] sm:$0xff] %v646
      %859 = vst [vmem:[%s208 + $0x78] sm:$0xff] %v649
      %860 = vst [vmem:[%s208 + $0x80] sm:$0xff] %v654
      %861 = vst [vmem:[%s208 + $0x88] sm:$0xff] %v657
      %862 = vst [vmem:[%s208 + $0x90] sm:$0xff] %v662
      %863 = vst [vmem:[%s208 + $0x98] sm:$0xff] %v665
      %864 = vst [vmem:[%s208 + $0xa0] sm:$0xff] %v670
      %865 = vst [vmem:[%s208 + $0xa8] sm:$0xff] %v673
      %866 = vst [vmem:[%s208 + $0xb0] sm:$0xff] %v678
      %867 = vst [vmem:[%s208 + $0xb8] sm:$0xff] %v681
      %868 = vst [vmem:[%s208 + $0xc0] sm:$0xff] %v686
      %869 = vst [vmem:[%s208 + $0xc8] sm:$0xff] %v689
      %870 = vst [vmem:[%s208 + $0xd0] sm:$0xff] %v694
      %871 = vst [vmem:[%s208 + $0xd8] sm:$0xff] %v697
      %872 = vst [vmem:[%s208 + $0xe0] sm:$0xff] %v702
      %873 = vst [vmem:[%s208 + $0xe8] sm:$0xff] %v705
      %874 = vst [vmem:[%s208 + $0xf0] sm:$0xff] %v710
      %875 = vst [vmem:[%s208 + $0xf8] sm:$0xff] %v713
      %876 = vst [vmem:[%s208 + $0x100] sm:$0xff] %v718
      %877 = vst [vmem:[%s208 + $0x108] sm:$0xff] %v721
      %878 = vst [vmem:[%s208 + $0x110] sm:$0xff] %v726
      %879 = vst [vmem:[%s208 + $0x118] sm:$0xff] %v729
      %880 = vst [vmem:[%s208 + $0x120] sm:$0xff] %v734
      %881 = vst [vmem:[%s208 + $0x128] sm:$0xff] %v737
      %882 = vst [vmem:[%s208 + $0x130] sm:$0xff] %v742
      %883 = vst [vmem:[%s208 + $0x138] sm:$0xff] %v745
      %884 = vst [vmem:[%s208 + $0x140] sm:$0xff] %v750
      %885 = vst [vmem:[%s208 + $0x148] sm:$0xff] %v753
      %886 = vst [vmem:[%s208 + $0x150] sm:$0xff] %v758
      %887 = vst [vmem:[%s208 + $0x158] sm:$0xff] %v761
      %888 = vst [vmem:[%s208 + $0x160] sm:$0xff] %v766
      %889 = vst [vmem:[%s208 + $0x168] sm:$0xff] %v769
      %890 = vst [vmem:[%s208 + $0x170] sm:$0xff] %v774
      %891 = vst [vmem:[%s208 + $0x178] sm:$0xff] %v777
      %892 = vst [vmem:[%s208 + $0x180] sm:$0xff] %v782
      %893 = vst [vmem:[%s208 + $0x188] sm:$0xff] %v785
      %894 = vst [vmem:[%s208 + $0x190] sm:$0xff] %v790
      %895 = vst [vmem:[%s208 + $0x198] sm:$0xff] %v793
      %896 = vst [vmem:[%s208 + $0x1a0] sm:$0xff] %v798
      %897 = vst [vmem:[%s208 + $0x1a8] sm:$0xff] %v801
      %898 = vst [vmem:[%s208 + $0x1b0] sm:$0xff] %v806
      %899 = vst [vmem:[%s208 + $0x1b8] sm:$0xff] %v809
      %900 = vst [vmem:[%s208 + $0x1c0] sm:$0xff] %v814
      %901 = vst [vmem:[%s208 + $0x1c8] sm:$0xff] %v817
      %902 = vst [vmem:[%s208 + $0x1d0] sm:$0xff] %v822
      %903 = vst [vmem:[%s208 + $0x1d8] sm:$0xff] %v825
      %904 = vst [vmem:[%s208 + $0x1e0] sm:$0xff] %v830
      %905 = vst [vmem:[%s208 + $0x1e8] sm:$0xff] %v833
      %906 = vst [vmem:[%s208 + $0x1f0] sm:$0xff] %v838
      %907 = vst [vmem:[%s208 + $0x1f8] sm:$0xff] %v841
      %s908 = smul.u32 64, %s19
      %p909 = scmp.lt.s32.totalorder %s18, 1
      %s910 = scalar_select %p909, %s18, 1
      %p911 = scmp.lt.s32.totalorder %s908, 63
      %s912 = scalar_select %p911, %s908, 63
      %s913 = smul.addr %s910, 64
      %s914 = sadd.s32 %s912, %s913
      %s915 = smul.addr %s914, 8
      %s916 = scalar_lea.vmem %s3, %s915
      // Predicated region
      $region33: #{conv_transpose3d_pallas.1} parent=31 // pred_check
        %p917 = pneg %p116
      $region34: #{conv_transpose3d_pallas.1} parent=31 // pred_check_branch
        %919 = sbr.rel (%p917) target = $region36
      $region35: #{conv_transpose3d_pallas.1} parent=31 // pred_region
        %s920 = smul.u32 64, %s19
      $region36: #{conv_transpose3d_pallas.1} parent=31 // pred_fallthru
        _
    $region32: #{conv_transpose3d_pallas.1} parent=5 // pred_fallthru
      _
    %p921 = scmp.le.s32.totalorder 2, %s9
    // Predicated region
    $region37: #{conv_transpose3d_pallas.1} parent=5 // pred_check
      %p922 = pneg %p921
    $region38: #{conv_transpose3d_pallas.1} parent=5 // pred_check_branch
      %924 = sbr.rel (%p922) target = $region40
    $region39: #{conv_transpose3d_pallas.1} parent=5 // pred_region
      %s925 = ssub.s32 %s9, 2
      // Predicated region
      $region41: #{conv_transpose3d_pallas.1} parent=39 // pred_check
        %p926 = pneg %p122
      $region42: #{conv_transpose3d_pallas.1} parent=39 // pred_check_branch
        %928 = sbr.rel (%p926) target = $region44
      $region43: #{conv_transpose3d_pallas.1} parent=39 // pred_region
        %s929 = smul.u32 64, %s21
        %p930 = scmp.lt.s32.totalorder %s20, 1
        %s931 = scalar_select %p930, %s20, 1
        %p932 = scmp.lt.s32.totalorder %s929, 63
        %s933 = scalar_select %p932, %s929, 63
        %s934 = smul.addr %s931, 64
        %s935 = sadd.s32 %s933, %s934
        %s936 = smul.addr %s935, 8
        %s937 = scalar_lea.vmem %s3, %s936
      $region44: #{conv_transpose3d_pallas.1} parent=39 // pred_fallthru
        _
    $region40: #{conv_transpose3d_pallas.1} parent=5 // pred_fallthru
      _
  $region6: #{conv_transpose3d_pallas.1} parent=0 // loop_footer
    %s13 = sadd.s32 1, %s9
  $region7: #{conv_transpose3d_pallas.1} parent=0 // loop_footer_branch
    %8 = sbr.rel target = $region3
  $region8: #{conv_transpose3d_pallas.1} parent=0 // loop_exit
    _

</llo_original>
